<compile_context>
chip_gen: v7x
topology: tpu7x:2x2x1
jax: 0.10.0
libtpu: 0.0.40
codegen_flags: <defaults>
</compile_context>

<pallas_src>
import jax
import jax.numpy as jnp
from jax.experimental import pallas as pl
from jax.experimental.pallas import tpu as pltpu


BN_EPS = 1e-5
LEAKY_SLOPE = 0.01
_LANE = 128
_SUBLANE = 8


def _round_up(x, m):
    return (x + m - 1) // m * m


def _sublane_tile(dtype):
    # f32 -> 8, bf16 -> 16, int8/fp8 -> 32 (sub-32-bit packs along sublanes).
    return _SUBLANE * max(1, 4 // jnp.dtype(dtype).itemsize)


def _vmem_row_bytes(C, HW, dtype):
    """VMEM footprint of one (1, C, HW) batch row after (sublane, lane) padding."""
    itemsize = jnp.dtype(dtype).itemsize
    return _round_up(C, _sublane_tile(dtype)) * _round_up(HW, _LANE) * itemsize


# --------------------------------------------------------------------------
# Shared epilogue: BatchNorm1d (training-mode batch stats) + LeakyReLU.
# --------------------------------------------------------------------------
def _bn_lrelu(y, gamma, beta):
    mean = jnp.mean(y, axis=0, keepdims=True)
    diff = y - mean
    var = jnp.mean(diff * diff, axis=0, keepdims=True)      # biased batch variance
    y_bn = diff * jax.lax.rsqrt(var + BN_EPS) * gamma + beta
    return jnp.where(y_bn >= 0, y_bn, LEAKY_SLOPE * y_bn)


# --------------------------------------------------------------------------
# Kernel 1 (tiled path): global average pool (over HW) + Linear (no bias).
# --------------------------------------------------------------------------
def _pool_fc_kernel(feat_ref, w_ref, y_ref):
    # feat_ref: (tb, C, HW) native NCHW block (bf16 or f32)
    # w_ref   : (C, Fp)     pre-transposed, zero-padded, pre-scaled (1/HW) weight
    # y_ref   : (tb, Fp)    f32 output block
    pooled = jnp.sum(feat_ref[...], axis=-1, dtype=jnp.float32)   # (tb, C) lane reduce
    y_ref[...] = jnp.dot(pooled.astype(w_ref.dtype), w_ref[...],
                         preferred_element_type=jnp.float32)


# --------------------------------------------------------------------------
# Kernel 2 (tiled path): BN + LeakyReLU over the exact (B, Fp) intermediate.
# --------------------------------------------------------------------------
def _bn_lrelu_kernel(y_ref, gamma_ref, beta_ref, out_ref):
    out_ref[...] = _bn_lrelu(y_ref[...], gamma_ref[...], beta_ref[...])


# --------------------------------------------------------------------------
# Fused kernel (small-batch path): pool + fc + BN + LeakyReLU in one call.
# --------------------------------------------------------------------------
def _fused_kernel(feat_ref, w_ref, gamma_ref, beta_ref, out_ref):
    pooled = jnp.sum(feat_ref[...], axis=-1, dtype=jnp.float32)   # (B, C)
    y = jnp.dot(pooled.astype(w_ref.dtype), w_ref[...],
                preferred_element_type=jnp.float32)               # (B, Fp)
    out_ref[...] = _bn_lrelu(y, gamma_ref[...], beta_ref[...])


def encoder_head(feat_nchw, fc_weight, bn_gamma, bn_beta, *,
                 mxu_dtype=None, max_block_bytes=4 << 20):
    """feat_nchw: (B, C, H, W) backbone feature map -> (B, 125) output.

    The feature map is consumed in its native NCHW memory order and dtype
    (no wrapper transpose / cast).  If the backbone emits bf16 features the
    MXU path is bf16; f32 features keep an exact f32 path.
    """
    B, C, H, W = feat_nchw.shape
    HW = H * W
    F = fc_weight.shape[0]
    Fp = _round_up(F, _LANE)                                     # 125 -> 128

    # Free reshape (contiguous), no relayout, no cast -> no extra HBM traffic.
    feat = feat_nchw.reshape(B, C, HW)
    in_dtype = feat.dtype
    if mxu_dtype is None:
        mxu_dtype = jnp.bfloat16 if in_dtype == jnp.bfloat16 else jnp.float32

    # fc weight: transposed to (C, Fp), zero-padded columns, pre-scaled by 1/HW
    # (folds the average-pool divide into the matmul), shipped in the MXU dtype.
    w = jnp.zeros((C, Fp), jnp.float32).at[:, :F].set(
        jnp.asarray(fc_weight, jnp.float32).T * (1.0 / HW)).astype(mxu_dtype)
    gamma = jnp.zeros((1, Fp), jnp.float32).at[0, :F].set(
        jnp.asarray(bn_gamma, jnp.float32))
    beta = jnp.zeros((1, Fp), jnp.float32).at[0, :F].set(
        jnp.asarray(bn_beta, jnp.float32))

    row_vmem = _vmem_row_bytes(C, HW, in_dtype)                  # padded VMEM bytes/row
    w_vmem = (_round_up(C, _sublane_tile(mxu_dtype)) * Fp
              * jnp.dtype(mxu_dtype).itemsize)
    feat_itemsize = jnp.dtype(in_dtype).itemsize

    fits_one = B * row_vmem <= max_block_bytes
    use_fused = fits_one and B < 2 * _SUBLANE

    # ---- small-batch path: single fused pallas_call --------------------------
    if use_fused:
        need = B * row_vmem + w_vmem + B * Fp * 4 + (2 << 20)
        vmem = pl.BlockSpec(memory_space=pltpu.MemorySpace.VMEM)
        out = pl.pallas_call(
            _fused_kernel,
            out_shape=jax.ShapeDtypeStruct((B, Fp), jnp.float32),
            in_specs=[vmem, vmem, vmem, vmem],
            out_specs=vmem,
            compiler_params=pltpu.CompilerParams(
                vmem_limit_bytes=int(min(max(need, 16 << 20), 56 << 20))),
            cost_estimate=pl.CostEstimate(
                flops=int(2 * B * C * Fp), transcendentals=0,
                bytes_accessed=int(B * C * HW * feat_itemsize
                                   + w_vmem + B * Fp * 4)),
        )(feat, w, gamma, beta)
        return out[:, :F]

    # ---- tiled path: B-tiled "parallel" grid, then whole-batch BN ------------
    max_tb = max(_SUBLANE, (max_block_bytes // row_vmem) // _SUBLANE * _SUBLANE)
    # Aim for >= 2 batch tiles so the parallel grid axis can shard across v7x's
    # two TensorCores (harmless on single-TC v5e/v6e).
    tb = min(max_tb, max(_SUBLANE, _round_up(pl.cdiv(B, 2), _SUBLANE)))
    b_pad = _round_up(B, tb)
    n_tiles = b_pad // tb
    if b_pad != B:
        feat = jnp.pad(feat, ((0, b_pad - B), (0, 0), (0, 0)))

    # Double-buffered feat + w + out blocks (+ margin).  Note: if a single
    # 8-row tile exceeds max_block_bytes, tb is clamped to 8 and this limit
    # grows accordingly (kept under v7x's 64 MiB physical VMEM at defaults).
    need = 2 * tb * row_vmem + 2 * w_vmem + 2 * tb * Fp * 4 + (2 << 20)
    vmem_limit = int(min(max(need, 16 << 20), 56 << 20))

    cost = pl.CostEstimate(
        flops=int(2 * b_pad * C * Fp), transcendentals=0,
        bytes_accessed=int(b_pad * C * HW * feat_itemsize
                           + w_vmem + b_pad * Fp * 4))

    y = pl.pallas_call(
        _pool_fc_kernel,
        out_shape=jax.ShapeDtypeStruct((b_pad, Fp), jnp.float32),
        grid=(n_tiles,),
        in_specs=[
            pl.BlockSpec((tb, C, HW), lambda i: (i, 0, 0)),
            pl.BlockSpec((C, Fp), lambda i: (0, 0)),
        ],
        out_specs=pl.BlockSpec((tb, Fp), lambda i: (i, 0)),
        compiler_params=pltpu.CompilerParams(
            dimension_semantics=("parallel",),
            vmem_limit_bytes=vmem_limit),
        cost_estimate=cost,
    )(feat, w)

    if b_pad != B:
        y = y[:B]                                            # drop padded (zero) rows

    # BatchNorm needs whole-batch statistics -> tiny second pass over (B, Fp).
    vmem = pl.BlockSpec(memory_space=pltpu.MemorySpace.VMEM)
    out = pl.pallas_call(
        _bn_lrelu_kernel,
        out_shape=jax.ShapeDtypeStruct((B, Fp), jnp.float32),
        in_specs=[vmem, vmem, vmem],
        out_specs=vmem,
    )(y, gamma, beta)

    return out[:, :F]                                        # drop padded feature cols


def reference_head(feat_nchw, fc_weight, bn_gamma, bn_beta):
    """Plain-JAX reference matching the PyTorch forward (training-mode BN)."""
    pooled = jnp.mean(feat_nchw.astype(jnp.float32), axis=(2, 3))  # (B, C)
    y = pooled @ jnp.asarray(fc_weight, jnp.float32).T             # (B, F)
    mean = jnp.mean(y, axis=0, keepdims=True)
    var = jnp.mean((y - mean) ** 2, axis=0, keepdims=True)
    y = (y - mean) / jnp.sqrt(var + BN_EPS)
    y = y * bn_gamma[None, :] + bn_beta[None, :]
    return jnp.where(y >= 0, y, LEAKY_SLOPE * y)


if __name__ == "__main__":
    # Small shapes consistent with the module:
    #   cfg['feature_len'] -> C (2048 for resnet-50; use 32 here)
    #   backbone feature map before the final avgpool: (B, C, H, W)
    B, C, H, W = 2, 32, 16, 16
    F = 125  # out_features of self.fc

    key = jax.random.PRNGKey(0)
    k_feat, k_w, k_feat2 = jax.random.split(key, 3)

    feat = jax.random.normal(k_feat, (B, C, H, W), dtype=jnp.float32)

    # Deterministic parameter init (shapes from the module's __init__).
    fc_weight = (jax.random.uniform(k_w, (F, C), dtype=jnp.float32) - 0.5) * (2.0 / jnp.sqrt(C))
    bn_gamma = jnp.ones((F,), dtype=jnp.float32)   # BatchNorm1d default init
    bn_beta = jnp.zeros((F,), dtype=jnp.float32)

    # 1) f32 feature map -> fused single-call path, exact f32 semantics.
    out_f32 = jax.block_until_ready(encoder_head(feat, fc_weight, bn_gamma, bn_beta))
    ref_f32 = reference_head(feat, fc_weight, bn_gamma, bn_beta)
    assert out_f32.shape == (B, F), out_f32.shape
    assert jnp.allclose(out_f32, ref_f32, atol=1e-4, rtol=1e-4), \
        float(jnp.max(jnp.abs(out_f32 - ref_f32)))

    # 2) bf16 feature map (backbone-emitted) -> bf16 MXU path; loose check vs
    #    a reference computed on the same bf16-cast features.
    feat_bf16 = feat.astype(jnp.bfloat16)
    out_bf16 = jax.block_until_ready(encoder_head(feat_bf16, fc_weight, bn_gamma, bn_beta))
    ref_bf16 = reference_head(feat_bf16.astype(jnp.float32), fc_weight, bn_gamma, bn_beta)
    assert out_bf16.shape == (B, F), out_bf16.shape
    assert jnp.allclose(out_bf16, ref_bf16, atol=5e-2, rtol=5e-2), \
        float(jnp.max(jnp.abs(out_bf16 - ref_bf16)))

    # 3) Tiled / padded-batch path with a tiny block budget (tb=8, b_pad=24, 3 tiles).
    B2 = 20
    feat2 = jax.random.normal(k_feat2, (B2, C, H, W), dtype=jnp.float32)
    out_tiled = jax.block_until_ready(
        encoder_head(feat2, fc_weight, bn_gamma, bn_beta, max_block_bytes=64 * 1024))
    ref_tiled = reference_head(feat2, fc_weight, bn_gamma, bn_beta)
    assert out_tiled.shape == (B2, F), out_tiled.shape
    assert jnp.allclose(out_tiled, ref_tiled, atol=1e-4, rtol=1e-4), \
        float(jnp.max(jnp.abs(out_tiled - ref_tiled)))

    # 4) Tiled path with the default budget (>= 2 tiles for v7x megacore).
    out_tiled2 = jax.block_until_ready(
        encoder_head(feat2, fc_weight, bn_gamma, bn_beta))
    assert jnp.allclose(out_tiled2, ref_tiled, atol=1e-4, rtol=1e-4), \
        float(jnp.max(jnp.abs(out_tiled2 - ref_tiled)))

    print("KERNEL_OK")
</pallas_src>

<mosaic_0001>
module attributes {stable_mosaic.version = 11 : i64} {
  func.func @_fused_kernel(%arg0: memref<2x32x256xf32, #tpu.memory_space<vmem>>, %arg1: memref<32x128xf32, #tpu.memory_space<vmem>>, %arg2: memref<1x128xf32, #tpu.memory_space<vmem>>, %arg3: memref<1x128xf32, #tpu.memory_space<vmem>>, %arg4: memref<2x128xf32, #tpu.memory_space<vmem>>) attributes {dimension_semantics = [], scalar_prefetch = 0 : i64, scratch_operands = 0 : i64, tpu.core_type = #tpu.core_type<tc>} {
    %c0 = arith.constant 0 : index
    %c0_0 = arith.constant 0 : index
    %c0_1 = arith.constant 0 : index
    %0 = vector.load %arg0[%c0, %c0_0, %c0_1] : memref<2x32x256xf32, #tpu.memory_space<vmem>>, vector<2x32x256xf32>
    %cst = arith.constant dense<0.000000e+00> : vector<2x32xf32>
    %1 = vector.multi_reduction <add>, %0, %cst [2] : vector<2x32x256xf32> to vector<2x32xf32>
    %c0_2 = arith.constant 0 : index
    %c0_3 = arith.constant 0 : index
    %2 = vector.load %arg1[%c0_2, %c0_3] : memref<32x128xf32, #tpu.memory_space<vmem>>, vector<32x128xf32>
    %cst_4 = arith.constant dense<0.000000e+00> : vector<2x128xf32>
    %3 = tpu.matmul %1, %2, %cst_4 {dimension_numbers = #tpu.dot_dimension_numbers<[1], [0], [0], [1], [0, 0, 1, 1], [], []>} : vector<2x32xf32>, vector<32x128xf32>, vector<2x128xf32> -> vector<2x128xf32>
    %c0_5 = arith.constant 0 : index
    %c0_6 = arith.constant 0 : index
    %4 = vector.load %arg2[%c0_5, %c0_6] : memref<1x128xf32, #tpu.memory_space<vmem>>, vector<1x128xf32>
    %c0_7 = arith.constant 0 : index
    %c0_8 = arith.constant 0 : index
    %5 = vector.load %arg3[%c0_7, %c0_8] : memref<1x128xf32, #tpu.memory_space<vmem>>, vector<1x128xf32>
    %cst_9 = arith.constant dense<0.000000e+00> : vector<128xf32>
    %6 = vector.multi_reduction <add>, %3, %cst_9 [0] : vector<2x128xf32> to vector<128xf32>
    %7 = vector.shape_cast %6 : vector<128xf32> to vector<1x128xf32>
    %cst_10 = arith.constant 2.000000e+00 : f32
    %8 = vector.broadcast %cst_10 : f32 to vector<1x128xf32>
    %9 = arith.divf %7, %8 : vector<1x128xf32>
    %10 = vector.broadcast %9 : vector<1x128xf32> to vector<2x128xf32>
    %11 = arith.subf %3, %10 : vector<2x128xf32>
    %12 = arith.mulf %11, %11 : vector<2x128xf32>
    %cst_11 = arith.constant dense<0.000000e+00> : vector<128xf32>
    %13 = vector.multi_reduction <add>, %12, %cst_11 [0] : vector<2x128xf32> to vector<128xf32>
    %14 = vector.shape_cast %13 : vector<128xf32> to vector<1x128xf32>
    %cst_12 = arith.constant 2.000000e+00 : f32
    %15 = vector.broadcast %cst_12 : f32 to vector<1x128xf32>
    %16 = arith.divf %14, %15 : vector<1x128xf32>
    %cst_13 = arith.constant 9.99999974E-6 : f32
    %17 = vector.broadcast %cst_13 : f32 to vector<1x128xf32>
    %18 = arith.addf %16, %17 : vector<1x128xf32>
    %19 = math.rsqrt %18 : vector<1x128xf32>
    %20 = vector.broadcast %19 : vector<1x128xf32> to vector<2x128xf32>
    %21 = arith.mulf %11, %20 : vector<2x128xf32>
    %22 = vector.broadcast %4 : vector<1x128xf32> to vector<2x128xf32>
    %23 = arith.mulf %21, %22 : vector<2x128xf32>
    %24 = vector.broadcast %5 : vector<1x128xf32> to vector<2x128xf32>
    %25 = arith.addf %23, %24 : vector<2x128xf32>
    %cst_14 = arith.constant 0.000000e+00 : f32
    %26 = vector.broadcast %cst_14 : f32 to vector<2x128xf32>
    %27 = arith.cmpf oge, %25, %26 : vector<2x128xf32>
    %cst_15 = arith.constant 0.00999999977 : f32
    %28 = vector.broadcast %cst_15 : f32 to vector<2x128xf32>
    %29 = arith.mulf %28, %25 : vector<2x128xf32>
    %30 = arith.select %27, %25, %29 : vector<2x128xi1>, vector<2x128xf32>
    %c0_16 = arith.constant 0 : index
    %c0_17 = arith.constant 0 : index
    %31 = vector.load %arg4[%c0_16, %c0_17] : memref<2x128xf32, #tpu.memory_space<vmem>>, vector<2x128xf32>
    tpu.vector_store %arg4[%c0_16, %c0_17], %30 {strides = array<i32>} : memref<2x128xf32, #tpu.memory_space<vmem>>, vector<2x128xf32>,
    return
  }
}

</mosaic_0001>

<llo_original>
// kernel: tpu_custom_call.1
$region0: #{tpu_custom_call.1}
  #allocation0 [shape = 'u32[]', space=smem, size = 0x4, offset = 0x4, fixed_abs, tag = 'smem constant byte address 0x4 - core index']
  #allocation1 [shape = 'u32[144,128]{1,0:T(1,128)}', space=vmem, size = 0x12000, scoped, tag = 'internal scratch']
  %s0 = inlined_call_operand.hbm [shape: f32[2,32,256], index: 0, kind: input, shape index: {}]
  %s1 = inlined_call_operand.hbm [shape: f32[32,128], index: 1, kind: input, shape index: {}]
  %s2 = inlined_call_operand.vmem [shape: f32[1,128], index: 2, kind: input, shape index: {}]
  %s3 = inlined_call_operand.vmem [shape: f32[1,128], index: 3, kind: input, shape index: {}]
  %s4 = inlined_call_operand.hbm [shape: f32[2,128], index: 4, kind: output, shape index: {}]
  %s5 = sld [smem:[#allocation0]]
  $region34: #{tpu_custom_call.1} parent=0
    _
  %s7 = ssub.s32 1, %s5
  %s8 = scalar_select 0, %s7, %s5
  $region1: #{tpu_custom_call.1} parent=0
    #allocation2 [shape = 'u8[65536]{0}', space=vmem, size = 0x10000, scoped, tag = 'input window, operand 0, single buffered']
    #allocation3 [shape = 's32[1]{0}', space=sflag, size = 0x4, scoped, tag = 'scoped memory for tpu_custom_call.1']
    #allocation4 [shape = 's32[1]{0}', space=sflag, size = 0x4, scoped, tag = 'scoped memory for tpu_custom_call.1']
    #allocation5 [shape = 'u8[16384]{0}', space=vmem, size = 0x4000, scoped, tag = 'input window, operand 1, single buffered']
    #allocation6 [shape = 's32[1]{0}', space=sflag, size = 0x4, scoped, tag = 'scoped memory for tpu_custom_call.1']
    #allocation7 [shape = 'u8[1024]{0}', space=vmem, size = 0x400, scoped, tag = 'output window, operand 0, single buffered']
    %9 = vsyncpa [#allocation3], 0
    %10 = vsyncpa [#allocation6], 0
    %11 = vsyncpa [#allocation4], 0
    // Predicated region
    $region2: #{tpu_custom_call.1} parent=1 // pred_check
      _
    $region3: #{tpu_custom_call.1} parent=1 // pred_check_branch
      %13 = sbr.rel (0) target = $region5
    $region4: #{tpu_custom_call.1} parent=1 // pred_region
      %s15 = ssub.s32 2048, 2048
      %16 = vsyncadd [#allocation3], %s15
      %s17 = sshll.u32 [#allocation2], 4
      %s18 = int_to_ptr.vmem [resolvable:$true] %s17
      %23 = dma.hbm_to_vmem [thread:$0]  %s0, 2048, %s18, [#allocation3], 256, 256, 16
    $region5: #{tpu_custom_call.1} parent=1 // pred_fallthru
      _
    // Predicated region
    $region6: #{tpu_custom_call.1} parent=1 // pred_check
      _
    $region7: #{tpu_custom_call.1} parent=1 // pred_check_branch
      %25 = sbr.rel (0) target = $region9
    $region8: #{tpu_custom_call.1} parent=1 // pred_region
      %s27 = ssub.s32 512, 512
      %28 = vsyncadd [#allocation6], %s27
      %s29 = sshll.u32 [#allocation5], 4
      %s30 = int_to_ptr.vmem [resolvable:$true] %s29
      %35 = dma.hbm_to_vmem [thread:$0]  %s1, 512, %s30, [#allocation6], 128, 128, 8
    $region9: #{tpu_custom_call.1} parent=1 // pred_fallthru
      _
    // Predicated region
    $region10: #{tpu_custom_call.1} parent=1 // pred_check
      _
    $region11: #{tpu_custom_call.1} parent=1 // pred_check_branch
      %37 = sbr.rel (0) target = $region13
    $region12: #{tpu_custom_call.1} parent=1 // pred_region
      _
    $region13: #{tpu_custom_call.1} parent=1 // pred_fallthru
      _
    // Predicated region
    $region14: #{tpu_custom_call.1} parent=1 // pred_check
      _
    $region15: #{tpu_custom_call.1} parent=1 // pred_check_branch
      %39 = sbr.rel (0) target = $region17
    $region16: #{tpu_custom_call.1} parent=1 // pred_region
      _
    $region17: #{tpu_custom_call.1} parent=1 // pred_fallthru
      _
    // Predicated region
    $region18: #{tpu_custom_call.1} parent=1 // pred_check
      _
    $region19: #{tpu_custom_call.1} parent=1 // pred_check_branch
      %41 = sbr.rel (0) target = $region21
    $region20: #{tpu_custom_call.1} parent=1 // pred_region
      %42 = dma.done [#allocation3], 2048
    $region21: #{tpu_custom_call.1} parent=1 // pred_fallthru
      _
    // Predicated region
    $region22: #{tpu_custom_call.1} parent=1 // pred_check
      _
    $region23: #{tpu_custom_call.1} parent=1 // pred_check_branch
      %44 = sbr.rel (0) target = $region25
    $region24: #{tpu_custom_call.1} parent=1 // pred_region
      %45 = dma.done [#allocation6], 512
    $region25: #{tpu_custom_call.1} parent=1 // pred_fallthru
      _
    %v46 = vld [vmem:[#allocation2] sm:$0xff]
    %v47 = vld [vmem:[#allocation2 + $0x8] sm:$0xff]
    %v48 = vld [vmem:[#allocation2 + $0x10] sm:$0xff]
    %v49 = vld [vmem:[#allocation2 + $0x18] sm:$0xff]
    %v50 = vld [vmem:[#allocation2 + $0x20] sm:$0xff]
    %v51 = vld [vmem:[#allocation2 + $0x28] sm:$0xff]
    %v52 = vld [vmem:[#allocation2 + $0x30] sm:$0xff]
    %v53 = vld [vmem:[#allocation2 + $0x38] sm:$0xff]
    %v54 = vld [vmem:[#allocation2 + $0x40] sm:$0xff]
    %v55 = vld [vmem:[#allocation2 + $0x48] sm:$0xff]
    %v56 = vld [vmem:[#allocation2 + $0x50] sm:$0xff]
    %v57 = vld [vmem:[#allocation2 + $0x58] sm:$0xff]
    %v58 = vld [vmem:[#allocation2 + $0x60] sm:$0xff]
    %v59 = vld [vmem:[#allocation2 + $0x68] sm:$0xff]
    %v60 = vld [vmem:[#allocation2 + $0x70] sm:$0xff]
    %v61 = vld [vmem:[#allocation2 + $0x78] sm:$0xff]
    %v62 = vadd.f32 %v46, %v47
    %63 = vadd.xlane.f32.xlu0 %v62
    %v64 = vpop.xlane.xlu0 %63
    %v65 = vadd.f32 %v48, %v49
    %66 = vadd.xlane.f32.xlu0 %v65
    %v67 = vpop.xlane.xlu0 %66
    %v68 = vadd.f32 %v50, %v51
    %69 = vadd.xlane.f32.xlu0 %v68
    %v70 = vpop.xlane.xlu0 %69
    %v71 = vadd.f32 %v52, %v53
    %72 = vadd.xlane.f32.xlu0 %v71
    %v73 = vpop.xlane.xlu0 %72
    %v74 = vadd.f32 %v54, %v55
    %75 = vadd.xlane.f32.xlu0 %v74
    %v76 = vpop.xlane.xlu0 %75
    %v77 = vadd.f32 %v56, %v57
    %78 = vadd.xlane.f32.xlu0 %v77
    %v79 = vpop.xlane.xlu0 %78
    %v80 = vadd.f32 %v58, %v59
    %81 = vadd.xlane.f32.xlu0 %v80
    %v82 = vpop.xlane.xlu0 %81
    %v83 = vadd.f32 %v60, %v61
    %84 = vadd.xlane.f32.xlu0 %v83
    %v85 = vpop.xlane.xlu0 %84
    %v86 = vld [vmem:[#allocation5] sm:$0xff]
    %v87 = vld [vmem:[#allocation5 + $0x8] sm:$0xff]
    %v88 = vld [vmem:[#allocation5 + $0x10] sm:$0xff]
    %v89 = vld [vmem:[#allocation5 + $0x18] sm:$0xff]
    %v98 = vlaneseq
    %v99 = vand.u32 %v98, 127
    %v100 = vlaneseq
    %v101 = vshrl.u32 %v100, 7
    %v102 = vsub.s32 %v99, %v101
    %v103 = vrot.slane %v64, %v102
    %v104 = vadd.s32 %v99, 4294967288
    %v105 = vlaneseq
    %v106 = vshrl.u32 %v105, 7
    %v107 = vsub.s32 %v104, %v106
    %v108 = vrot.slane %v67, %v107
    %vm109 = vcmask 130112
    %v110 = vsel %vm109, %v108, %v103
    %v111 = vadd.s32 %v99, 4294967280
    %v112 = vlaneseq
    %v113 = vshrl.u32 %v112, 7
    %v114 = vsub.s32 %v111, %v113
    %v115 = vrot.slane %v70, %v114
    %vm116 = vcmask 195712
    %v117 = vsel %vm116, %v115, %v110
    %v118 = vadd.s32 %v99, 4294967272
    %v119 = vlaneseq
    %v120 = vshrl.u32 %v119, 7
    %v121 = vsub.s32 %v118, %v120
    %v122 = vrot.slane %v73, %v121
    %vm123 = vcmask 261312
    %v124 = vsel %vm123, %v122, %v117
    %v125 = vlaneseq
    %v126 = vshrl.u32 %v125, 7
    %v127 = vsub.s32 %v99, %v126
    %v128 = vrot.slane %v76, %v127
    %v129 = vlaneseq
    %v130 = vshrl.u32 %v129, 7
    %v131 = vsub.s32 %v104, %v130
    %v132 = vrot.slane %v79, %v131
    %v133 = vsel %vm109, %v132, %v128
    %v134 = vlaneseq
    %v135 = vshrl.u32 %v134, 7
    %v136 = vsub.s32 %v111, %v135
    %v137 = vrot.slane %v82, %v136
    %v138 = vsel %vm116, %v137, %v133
    %v139 = vlaneseq
    %v140 = vshrl.u32 %v139, 7
    %v141 = vsub.s32 %v118, %v140
    %v142 = vrot.slane %v85, %v141
    %v143 = vsel %vm123, %v142, %v138
    %vm144 = vcmask 1041409
    %v145 = vsel %vm144, %v143, %v124
    %vm146 = vcmask 261120
    %v147 = vsel %vm146, %v145, 0
    %149 = vmatprep.subr.mxu0 0.0
    %150 = vmatpush1.msra.mxu0 %v86
    %151 = vmatprep.subr.mxu0 0.0
    %152 = vmatpush1.msra.mxu0 %v87
    %153 = vmatprep.subr.mxu0 0.0
    %154 = vmatpush1.msra.mxu0 %v88
    %155 = vmatprep.subr.mxu0 0.0
    %156 = vmatpush1.msra.mxu0 %v89
    %157 = vmatprep.subr.mxu0 0.0
    %158 = vmatpush1.msra.mxu0 0.0
    %159 = vmatprep.subr.mxu0 0.0
    %160 = vmatpush1.msra.mxu0 0.0
    %161 = vmatprep.subr.mxu0 0.0
    %162 = vmatpush1.msra.mxu0 0.0
    %163 = vmatprep.subr.mxu0 0.0
    %164 = vmatpush1.msra.mxu0 0.0
    %165 = vmatprep.subr.mxu0 0.0
    %166 = vmatpush1.msra.mxu0 0.0
    %167 = vmatprep.subr.mxu0 0.0
    %168 = vmatpush1.msra.mxu0 0.0
    %169 = vmatprep.subr.mxu0 0.0
    %170 = vmatpush1.msra.mxu0 0.0
    %171 = vmatprep.subr.mxu0 0.0
    %172 = vmatpush1.msra.mxu0 0.0
    %173 = vmatprep.subr.mxu0 0.0
    %174 = vmatpush1.msra.mxu0 0.0
    %175 = vmatprep.subr.mxu0 0.0
    %176 = vmatpush1.msra.mxu0 0.0
    %177 = vmatprep.subr.mxu0 0.0
    %178 = vmatpush1.msra.mxu0 0.0
    %179 = vmatprep.subr.mxu0 0.0
    %180 = vmatpush1.msra.mxu0 0.0
    %181 = vmatprep.subr.mxu0 0.0
    %182 = vmatpush1.msra.mxu0 0.0
    %183 = vmatprep.subr.mxu0 0.0
    %184 = vmatpush1.msra.mxu0 0.0
    %185 = vmatprep.subr.mxu0 0.0
    %186 = vmatpush1.msra.mxu0 0.0
    %187 = vmatprep.subr.mxu0 0.0
    %188 = vmatpush1.msra.mxu0 0.0
    %189 = vmatprep.subr.mxu0 0.0
    %190 = vmatpush1.msra.mxu0 0.0
    %191 = vmatprep.subr.mxu0 0.0
    %192 = vmatpush1.msra.mxu0 0.0
    %193 = vmatprep.subr.mxu0 0.0
    %194 = vmatpush1.msra.mxu0 0.0
    %195 = vmatprep.subr.mxu0 0.0
    %196 = vmatpush1.msra.mxu0 0.0
    %197 = vmatprep.subr.mxu0 0.0
    %198 = vmatpush1.msra.mxu0 0.0
    %199 = vmatprep.subr.mxu0 0.0
    %200 = vmatpush1.msra.mxu0 0.0
    %201 = vmatprep.subr.mxu0 0.0
    %202 = vmatpush1.msra.mxu0 0.0
    %203 = vmatprep.subr.mxu0 0.0
    %204 = vmatpush1.msra.mxu0 0.0
    %205 = vmatprep.subr.mxu0 0.0
    %206 = vmatpush1.msra.mxu0 0.0
    %207 = vmatprep.subr.mxu0 0.0
    %208 = vmatpush1.msra.mxu0 0.0
    %209 = vmatprep.subr.mxu0 0.0
    %210 = vmatpush1.msra.mxu0 0.0
    %211 = vmatprep.subr.mxu0 0.0
    %212 = vmatpush1.msra.mxu0 0.0
    %213 = vmatprep.mubr.f32.mxu0 0.0
    %214 = vmatmul.mubr.f32.gmra.mrb[0].mxu0 %v147
    %v215 = vpop.f32.mrb[0].mxu0
    %v216 = vadd.f32 0.0, %v215
    %v217 = vpop.f32.mrb[0].mxu0
    %218 = vdwg.mxu0
    %v219 = vld [vmem:[%s2] sm:$0x1]
    %v220 = vld [vmem:[%s3] sm:$0x1]
    %vm221 = vcmask 1041408
    %v222 = vsel %vm221, %v216, 0.0
    %v223 = vrot.slane %v222, 4
    %v224 = vadd.f32 %v222, %v223
    %v225 = vrot.slane %v224, 2
    %v226 = vadd.f32 %v224, %v225
    %v227 = vrot.slane %v226, 1
    %v228 = vadd.f32 %v226, %v227
    %v229 = vrcp.pop 2.0
    %v230 = vmul.f32 %v228, %v229
    %v231 = vsub.f32 %v216, %v230
    %v232 = vmul.f32 %v231, %v231
    %v233 = vsel %vm221, %v232, 0.0
    %v234 = vrot.slane %v233, 4
    %v235 = vadd.f32 %v233, %v234
    %v236 = vrot.slane %v235, 2
    %v237 = vadd.f32 %v235, %v236
    %v238 = vrot.slane %v237, 1
    %v239 = vadd.f32 %v237, %v238
    %v240 = vmul.f32 %v239, %v229
    %v241 = vadd.f32 %v240, 1e-05
    %v242 = vrsqrt.pop %v241
    %v243 = vmul.f32 %v231, %v242
    %v245 = vlaneseq
    %v246 = vshrl.u32 %v245, 7
    %v247 = vsub.s32 0, %v246
    %v248 = vrot.slane %v219, %v247
    %v250 = vmul.f32 %v243, %v248
    %v252 = vlaneseq
    %v253 = vshrl.u32 %v252, 7
    %v254 = vsub.s32 0, %v253
    %v255 = vrot.slane %v220, %v254
    %v257 = vadd.f32 %v250, %v255
    %vm258 = vcmp.ge.f32.partialorder %v257, 0.0
    %v259 = vmul.f32 %v257, 0.01
    %v260 = vsel %vm258, %v257, %v259
    %261 = vst [vmem:[#allocation7] sm:$0x3] %v260
    // Predicated region
    $region26: #{tpu_custom_call.1} parent=1 // pred_check
      _
    $region27: #{tpu_custom_call.1} parent=1 // pred_check_branch
      %263 = sbr.rel (0) target = $region29
    $region28: #{tpu_custom_call.1} parent=1 // pred_region
      %s265 = ssub.s32 32, 32
      %266 = vsyncadd [#allocation4], %s265
      %s268 = sshll.u32 [#allocation7], 4
      %s269 = int_to_ptr.vmem [resolvable:$true] %s268
      %271 = dma.vmem_to_hbm [thread:$0]  %s269, 32, %s4, [#allocation4]
    $region29: #{tpu_custom_call.1} parent=1 // pred_fallthru
      _
    // Predicated region
    $region30: #{tpu_custom_call.1} parent=1 // pred_check
      _
    $region31: #{tpu_custom_call.1} parent=1 // pred_check_branch
      %273 = sbr.rel (0) target = $region33
    $region32: #{tpu_custom_call.1} parent=1 // pred_region
      %274 = dma.done [#allocation4], 32
    $region33: #{tpu_custom_call.1} parent=1 // pred_fallthru
      _
    %275 = vsyncpa [#allocation3], 1
    %276 = vsyncpa [#allocation6], 1
    %277 = vsyncpa [#allocation4], 1

</llo_original>
